<compile_context>
chip_gen: v5e
topology: v5e:2x2
jax: 0.10.0
libtpu: 0.0.40
codegen_flags: <defaults>
</compile_context>

<pallas_src>
import functools

import jax
import jax.numpy as jnp
from jax.experimental import pallas as pl
from jax.experimental.pallas import tpu as pltpu


def _round_up(n, m):
    return ((n + m - 1) // m) * m


def _cdiv(a, b):
    return -(-a // b)


@functools.lru_cache(maxsize=None)
def _vmem_capacity_bytes():
    """Per-TensorCore VMEM capacity; conservative 64 MiB (v7x) fallback if query fails."""
    try:
        return int(pltpu.get_tpu_info().vmem_capacity_bytes)
    except Exception:
        return 64 * 2**20


@functools.lru_cache(maxsize=None)
def _single_buffer_supported():
    """One-time cached probe: does this jax/Mosaic accept pipeline_mode=pl.Buffered(1)?

    Probed once with a tiny compile -- NOT per call and NOT via a try/except around the
    real kernel (which double-compiles and misfires under an outer jax.jit).
    """
    try:
        def _copy(x_ref, o_ref):
            o_ref[...] = x_ref[...]

        fn = pl.pallas_call(
            _copy,
            out_shape=jax.ShapeDtypeStruct((8, 128), jnp.float32),
            grid_spec=pltpu.PrefetchScalarGridSpec(
                num_scalar_prefetch=0,
                grid=(1,),
                in_specs=[pl.BlockSpec((8, 128), lambda i: (0, 0),
                                       pipeline_mode=pl.Buffered(1))],
                out_specs=pl.BlockSpec((8, 128), lambda i: (0, 0)),
            ),
        )
        jax.jit(fn).lower(jax.ShapeDtypeStruct((8, 128), jnp.float32)).compile()
        return True
    except Exception:
        return False


def _pick_batch_tile(B, tile_m):
    """Nearly-full batch tiles: no blind padding of B up to tile_m."""
    tile_m = max(8, _round_up(tile_m, 8))
    nt = max(1, _cdiv(B, tile_m))
    if nt == 1 and B >= 256:
        # Give v7x's second TensorCore a "parallel" step; one extra grid step (~0.35 us)
        # is noise on single-TC v5e/v6e.
        nt = 2
    tm = _round_up(_cdiv(B, nt), 8)
    # Prefer an MXU/lane-friendly multiple of 128 only if the masked tail stays tiny.
    tm128 = _round_up(tm, 128)
    if tm128 <= tile_m and nt * tm128 - B <= max(B // 16, 8):
        tm = tm128
    return tm, _cdiv(B, tm)


def _pad2d(a, rows, cols, dtype):
    a = a.astype(dtype)
    if a.shape == (rows, cols):
        return a
    return jnp.zeros((rows, cols), dtype).at[:a.shape[0], :a.shape[1]].set(a)


# ---------------------------------------------------------------------------
# Kernels
# ---------------------------------------------------------------------------
def _ffn_resident_kernel(x_ref, w1_ref, b1_ref, w2_ref, b2_ref, o_ref):
    """Whole-weight-resident path: both matmuls + bias + ReLU + sigmoid fused."""
    x = x_ref[...].astype(w1_ref.dtype)                                # cast in VMEM (no wrapper pass)
    h = jnp.dot(x, w1_ref[...], preferred_element_type=jnp.float32)    # MXU, f32 accumulate
    h = jnp.maximum(h + b1_ref[...], 0.0)                              # bias + ReLU (VPU)
    y = jnp.dot(h.astype(w2_ref.dtype), w2_ref[...],
                preferred_element_type=jnp.float32)                    # MXU, f32 accumulate
    y = y + b2_ref[...]
    # Dropout is identity in eval/inference mode (scaling happens only in training).
    # TODO(synk): training-mode dropout (pltpu.prng_seed + prng_random_bits mask) not emitted.
    o_ref[...] = jax.nn.sigmoid(y).astype(o_ref.dtype)                 # EUP exp + VPU


def _ffn_hidden_tiled_kernel(x_ref, w1_ref, b1_ref, w2_ref, b2_ref, o_ref, acc_ref):
    """Streamed-hidden path for weights too large for VMEM residency (e.g. v7x 64 MiB/TC).

    grid = (batch_tiles, hidden_tiles); hidden axis is last and "arbitrary"; the output
    block is resident across it via an f32 accumulator scratch.
    """
    k = pl.program_id(1)

    @pl.when(k == 0)
    def _init():
        acc_ref[...] = jnp.zeros_like(acc_ref)

    x = x_ref[...].astype(w1_ref.dtype)
    h = jnp.dot(x, w1_ref[...], preferred_element_type=jnp.float32)
    h = jnp.maximum(h + b1_ref[...], 0.0)                              # per-hidden-column -> exact under tiling
    acc_ref[...] += jnp.dot(h.astype(w2_ref.dtype), w2_ref[...],
                            preferred_element_type=jnp.float32)

    @pl.when(k == pl.num_programs(1) - 1)
    def _finalize():
        # Dropout: identity in eval mode. TODO(synk): training-mode dropout not emitted.
        o_ref[...] = jax.nn.sigmoid(acc_ref[...] + b2_ref[...]).astype(o_ref.dtype)


# ---------------------------------------------------------------------------
# Wrapper factory (pads/casts params once; returned closure is jit-able)
# ---------------------------------------------------------------------------
def make_ffn(w1, b1, w2, b2, *, tile_m=256, tile_k=512,
             compute_dtype=jnp.bfloat16, out_dtype=jnp.bfloat16,
             force_hidden_tiled=False):
    """Build `fn(x) -> sigmoid(relu(x @ w1 + b1) @ w2 + b2)` as a fused Pallas TPU kernel.

      w1: (in_features, hidden)   b1: (hidden,) or (1, hidden)
      w2: (hidden, out_features)  b2: (out,)    or (1, out)

    compute_dtype: MXU input dtype (bf16 default; accumulation always f32).
                   NOTE: bf16 changes numerics vs an f32 PyTorch module (~1e-2 level).
    out_dtype:     returned activation dtype (bf16 default -> half the writeback traffic).
    """
    in_f, hid = w1.shape
    hid2, out_f = w2.shape
    assert hid2 == hid, "w1/w2 hidden dims disagree"

    cdt = jnp.dtype(compute_dtype)
    odt = jnp.dtype(out_dtype)
    cb, ob = cdt.itemsize, odt.itemsize

    out_p = _round_up(out_f, 128)            # lane-dense output store (full `vst`)
    hid_p = _round_up(hid, 128)
    vmem_cap = _vmem_capacity_bytes()

    # Whole-weight residency vs streamed-hidden pipeline (generation aware: an FFN that is
    # resident in v5e/v6e's 128 MiB may need streaming on v7x's 64 MiB per TensorCore).
    weight_bytes0 = (in_f * hid_p + hid_p * out_p) * cb
    hidden_tiled = bool(force_hidden_tiled) or weight_bytes0 > int(0.6 * vmem_cap)

    if hidden_tiled:
        tk = min(max(128, _round_up(tile_k, 128)), hid_p)
        hid_p = _round_up(hid, tk)           # hidden padded so tk divides it exactly
    else:
        tk = None
    weight_bytes = (in_f * hid_p + hid_p * out_p) * cb

    # ---- one-time padding / casting (zero padding keeps the math exact) ----
    w1p = _pad2d(w1, in_f, hid_p, cdt)
    w2p = _pad2d(w2, hid_p, out_p, cdt)
    b1p = _pad2d(jnp.reshape(b1, (1, hid)), 1, hid_p, jnp.float32)
    b2p = _pad2d(jnp.reshape(b2, (1, out_f)), 1, out_p, jnp.float32)

    single_buf = _single_buffer_supported()

    def _const_spec(shape, index_map):
        # Constant-index (VMEM-resident) blocks: single buffer when supported.
        if single_buf:
            return pl.BlockSpec(shape, index_map, pipeline_mode=pl.Buffered(1))
        return pl.BlockSpec(shape, index_map)

    def fn(x):
        assert x.ndim == 2 and x.shape[1] == in_f, "x must be (batch, in_features)"
        B = x.shape[0]
        xb = jnp.dtype(x.dtype).itemsize
        tm, nb = _pick_batch_tile(B, tile_m)
        wmul = 1 if single_buf else 2

        if not hidden_tiled:
            grid = (nb,)
            in_specs = [
                pl.BlockSpec((tm, in_f), lambda i: (i, 0)),            # x tile streams
                _const_spec((in_f, hid_p), lambda i: (0, 0)),          # w1 resident
                _const_spec((1, hid_p), lambda i: (0, 0)),             # b1
                _const_spec((hid_p, out_p), lambda i: (0, 0)),         # w2 resident
                _const_spec((1, out_p), lambda i: (0, 0)),             # b2
            ]
            out_specs = pl.BlockSpec((tm, out_p), lambda i: (i, 0))    # lane-dense store
            scratch = []
            kernel = _ffn_resident_kernel
            semantics = ("parallel",)
            vmem_needed = (
                2 * tm * in_f * xb                        # x tile, double-buffered
                + 2 * tm * out_p * ob                     # out tile, double-buffered
                + wmul * weight_bytes                     # w1 + w2 (1 buf if Buffered(1))
                + wmul * 8 * (hid_p + out_p) * 4          # biases (sublane-padded)
                + tm * hid_p * (4 + cb)                   # h (f32) + its MXU-dtype copy
                + tm * out_p * 4                          # y (f32)
            )
            weight_hbm_reads = weight_bytes               # read once, stays resident
        else:
            nk = hid_p // tk
            grid = (nb, nk)
            in_specs = [
                pl.BlockSpec((tm, in_f), lambda i, k: (i, 0)),         # x tile resident over k
                pl.BlockSpec((in_f, tk), lambda i, k: (0, k)),         # w1 chunk streams
                pl.BlockSpec((1, tk), lambda i, k: (0, k)),            # b1 chunk
                pl.BlockSpec((tk, out_p), lambda i, k: (k, 0)),        # w2 chunk streams
                _const_spec((1, out_p), lambda i, k: (0, 0)),          # b2
            ]
            out_specs = pl.BlockSpec((tm, out_p), lambda i, k: (i, 0))
            scratch = [pltpu.VMEM((tm, out_p), jnp.float32)]           # f32 accumulator
            kernel = _ffn_hidden_tiled_kernel
            semantics = ("parallel", "arbitrary")                      # reduction axis last
            vmem_needed = (
                2 * tm * in_f * xb
                + 2 * tm * out_p * ob
                + 2 * (in_f * tk + tk * out_p) * cb       # streamed w1/w2 chunks (2 bufs)
                + 2 * 8 * tk * 4 + wmul * 8 * out_p * 4   # bias chunks
                + tm * out_p * 4                          # accumulator scratch
                + tm * tk * (4 + cb)                      # h chunk (f32) + MXU-dtype copy
            )
            weight_hbm_reads = nb * weight_bytes          # streamed once per batch tile

        # Generation-aware cap: ~48 MiB on v7x (64 MiB/TC), ~96 MiB on v5e/v6e (128 MiB).
        vmem_limit = int(min(max(int(1.3 * vmem_needed), 16 * 2**20),
                             int(0.75 * vmem_cap)))

        cost = pl.CostEstimate(
            flops=int(2 * B * (in_f * hid_p + hid_p * out_p)),
            transcendentals=int(B * out_p),                            # sigmoid exp
            bytes_accessed=int(B * in_f * xb + weight_hbm_reads
                               + (hid_p + out_p) * 4 + B * out_p * ob),
        )

        out = pl.pallas_call(
            kernel,
            out_shape=jax.ShapeDtypeStruct((B, out_p), odt),
            grid_spec=pltpu.PrefetchScalarGridSpec(
                num_scalar_prefetch=0,
                grid=grid,
                in_specs=in_specs,
                out_specs=out_specs,
                scratch_shapes=scratch,
            ),
            compiler_params=pltpu.CompilerParams(
                dimension_semantics=semantics,
                vmem_limit_bytes=vmem_limit,
            ),
            cost_estimate=cost,
        )(x, w1p, b1p, w2p, b2p)

        # Only padded output columns need slicing; batch was never padded.
        return out if out_p == out_f else out[:, :out_f]

    return fn


def init_params(key, in_features, hidden_dim, out_features):
    """nn.Linear-style U(-1/sqrt(fan_in), 1/sqrt(fan_in)) init (deterministic given key)."""
    k1, k2, k3, k4 = jax.random.split(key, 4)
    bound1 = 1.0 / jnp.sqrt(in_features)
    bound2 = 1.0 / jnp.sqrt(hidden_dim)
    w1 = jax.random.uniform(k1, (in_features, hidden_dim), jnp.float32, -bound1, bound1)
    b1 = jax.random.uniform(k2, (hidden_dim,), jnp.float32, -bound1, bound1)
    w2 = jax.random.uniform(k3, (hidden_dim, out_features), jnp.float32, -bound2, bound2)
    b2 = jax.random.uniform(k4, (out_features,), jnp.float32, -bound2, bound2)
    return w1, b1, w2, b2


if __name__ == "__main__":
    # Small shapes consistent with the module: x is (batch, in_features).
    batch, in_features, hidden_dim, out_features = 8, 32, 64, 16
    key = jax.random.PRNGKey(0)
    kx, kp = jax.random.split(key)
    x = jax.random.normal(kx, (batch, in_features), jnp.float32)
    w1, b1, w2, b2 = init_params(kp, in_features, hidden_dim, out_features)

    # Pure-JAX reference == PyTorch module in eval mode (dropout is identity).
    ref = jax.nn.sigmoid(jnp.maximum(x @ w1 + b1[None, :], 0.0) @ w2 + b2[None, :])

    # 1) f32 MXU inputs, f32 output: tight check of the weight-resident kernel.
    ffn_f32 = jax.jit(make_ffn(w1, b1, w2, b2,
                               compute_dtype=jnp.float32, out_dtype=jnp.float32))
    out_f32 = jax.block_until_ready(ffn_f32(x))
    assert out_f32.shape == (batch, out_features)
    assert jnp.allclose(out_f32, ref, atol=1e-5, rtol=1e-5), "f32 resident path mismatch"

    # 2) Streamed-hidden (accumulator) pipeline forced on, f32: tight check.
    ffn_kt = jax.jit(make_ffn(w1, b1, w2, b2, compute_dtype=jnp.float32,
                              out_dtype=jnp.float32, force_hidden_tiled=True))
    out_kt = jax.block_until_ready(ffn_kt(x))
    assert out_kt.shape == (batch, out_features)
    assert jnp.allclose(out_kt, ref, atol=1e-5, rtol=1e-5), "hidden-tiled path mismatch"

    # 3) Default path: bf16 MXU inputs + bf16 output (f32 accumulation): looser tolerance.
    ffn_def = jax.jit(make_ffn(w1, b1, w2, b2))
    out_def = jax.block_until_ready(ffn_def(x))
    assert out_def.shape == (batch, out_features)
    assert out_def.dtype == jnp.bfloat16
    assert jnp.allclose(out_def.astype(jnp.float32), ref, atol=3e-2, rtol=3e-2), \
        "bf16 default path mismatch"

    print("KERNEL_OK")
</pallas_src>

<mosaic_0001>
module attributes {stable_mosaic.version = 11 : i64} {
  func.func @_ffn_resident_kernel(%arg0: i32, %arg1: memref<8x32xf32, #tpu.memory_space<vmem>>, %arg2: memref<32x128xf32, #tpu.memory_space<vmem>>, %arg3: memref<1x128xf32, #tpu.memory_space<vmem>>, %arg4: memref<128x128xf32, #tpu.memory_space<vmem>>, %arg5: memref<1x128xf32, #tpu.memory_space<vmem>>, %arg6: memref<8x128xf32, #tpu.memory_space<vmem>>) attributes {dimension_semantics = [#tpu.dimension_semantics<parallel>], iteration_bounds = array<i64: 1>, scalar_prefetch = 0 : i64, scratch_operands = 0 : i64, tpu.core_type = #tpu.core_type<tc>, window_params = [{transform_indices = @transform_0, window_bounds = array<i64: 8, 32>}, {pipeline_mode = #tpu.pipeline_mode<synchronous>, transform_indices = @transform_1, window_bounds = array<i64: 32, 128>}, {pipeline_mode = #tpu.pipeline_mode<synchronous>, transform_indices = @transform_2, window_bounds = array<i64: 1, 128>}, {pipeline_mode = #tpu.pipeline_mode<synchronous>, transform_indices = @transform_3, window_bounds = array<i64: 128, 128>}, {pipeline_mode = #tpu.pipeline_mode<synchronous>, transform_indices = @transform_4, window_bounds = array<i64: 1, 128>}, {transform_indices = @transform_5, window_bounds = array<i64: 8, 128>}]} {
    %c0 = arith.constant 0 : index
    %c0_0 = arith.constant 0 : index
    %0 = vector.load %arg1[%c0, %c0_0] : memref<8x32xf32, #tpu.memory_space<vmem>>, vector<8x32xf32>
    %c0_1 = arith.constant 0 : index
    %c0_2 = arith.constant 0 : index
    %1 = vector.load %arg2[%c0_1, %c0_2] : memref<32x128xf32, #tpu.memory_space<vmem>>, vector<32x128xf32>
    %cst = arith.constant dense<0.000000e+00> : vector<8x128xf32>
    %2 = tpu.matmul %0, %1, %cst {dimension_numbers = #tpu.dot_dimension_numbers<[1], [0], [0], [1], [0, 0, 1, 1], [], []>} : vector<8x32xf32>, vector<32x128xf32>, vector<8x128xf32> -> vector<8x128xf32>
    %c0_3 = arith.constant 0 : index
    %c0_4 = arith.constant 0 : index
    %3 = vector.load %arg3[%c0_3, %c0_4] : memref<1x128xf32, #tpu.memory_space<vmem>>, vector<1x128xf32>
    %4 = vector.broadcast %3 : vector<1x128xf32> to vector<8x128xf32>
    %5 = arith.addf %2, %4 : vector<8x128xf32>
    %cst_5 = arith.constant 0.000000e+00 : f32
    %6 = vector.broadcast %cst_5 : f32 to vector<8x128xf32>
    %7 = arith.maximumf %5, %6 : vector<8x128xf32>
    %c0_6 = arith.constant 0 : index
    %c0_7 = arith.constant 0 : index
    %8 = vector.load %arg4[%c0_6, %c0_7] : memref<128x128xf32, #tpu.memory_space<vmem>>, vector<128x128xf32>
    %cst_8 = arith.constant dense<0.000000e+00> : vector<8x128xf32>
    %9 = tpu.matmul %7, %8, %cst_8 {dimension_numbers = #tpu.dot_dimension_numbers<[1], [0], [0], [1], [0, 0, 1, 1], [], []>} : vector<8x128xf32>, vector<128x128xf32>, vector<8x128xf32> -> vector<8x128xf32>
    %c0_9 = arith.constant 0 : index
    %c0_10 = arith.constant 0 : index
    %10 = vector.load %arg5[%c0_9, %c0_10] : memref<1x128xf32, #tpu.memory_space<vmem>>, vector<1x128xf32>
    %11 = vector.broadcast %10 : vector<1x128xf32> to vector<8x128xf32>
    %12 = arith.addf %9, %11 : vector<8x128xf32>
    %13 = arith.negf %12 : vector<8x128xf32>
    %14 = math.exp %13 : vector<8x128xf32>
    %cst_11 = arith.constant 1.000000e+00 : f32
    %15 = vector.broadcast %cst_11 : f32 to vector<8x128xf32>
    %16 = arith.addf %15, %14 : vector<8x128xf32>
    %17 = arith.divf %15, %16 : vector<8x128xf32>
    %c0_12 = arith.constant 0 : index
    %c0_13 = arith.constant 0 : index
    %18 = vector.load %arg6[%c0_12, %c0_13] : memref<8x128xf32, #tpu.memory_space<vmem>>, vector<8x128xf32>
    tpu.vector_store %arg6[%c0_12, %c0_13], %17 {strides = array<i32>} : memref<8x128xf32, #tpu.memory_space<vmem>>, vector<8x128xf32>,
    return
  }
  func.func @transform_0(%arg0: i32) -> (i32, i32) {
    %c0_i32 = arith.constant 0 : i32
    %c0_i32_0 = arith.constant 0 : i32
    return %arg0, %c0_i32 : i32, i32
  }
  func.func @transform_1(%arg0: i32) -> (i32, i32) {
    %c0_i32 = arith.constant 0 : i32
    %c0_i32_0 = arith.constant 0 : i32
    %c0_i32_1 = arith.constant 0 : i32
    return %c0_i32, %c0_i32_0 : i32, i32
  }
  func.func @transform_2(%arg0: i32) -> (i32, i32) {
    %c0_i32 = arith.constant 0 : i32
    %c0_i32_0 = arith.constant 0 : i32
    %c0_i32_1 = arith.constant 0 : i32
    return %c0_i32, %c0_i32_0 : i32, i32
  }
  func.func @transform_3(%arg0: i32) -> (i32, i32) {
    %c0_i32 = arith.constant 0 : i32
    %c0_i32_0 = arith.constant 0 : i32
    %c0_i32_1 = arith.constant 0 : i32
    return %c0_i32, %c0_i32_0 : i32, i32
  }
  func.func @transform_4(%arg0: i32) -> (i32, i32) {
    %c0_i32 = arith.constant 0 : i32
    %c0_i32_0 = arith.constant 0 : i32
    %c0_i32_1 = arith.constant 0 : i32
    return %c0_i32, %c0_i32_0 : i32, i32
  }
  func.func @transform_5(%arg0: i32) -> (i32, i32) {
    %c0_i32 = arith.constant 0 : i32
    %c0_i32_0 = arith.constant 0 : i32
    return %arg0, %c0_i32 : i32, i32
  }
}

</mosaic_0001>

<llo_original>
// kernel: fn.1
$region0: #{fn.1}
  #allocation0 [shape = 'u32[]', space=smem, size = 0x4, offset = 0x4, fixed_abs, tag = 'smem constant byte address 0x4 - core index']
  #allocation1 [shape = 'u32[72,128]{1,0:T(1,128)}', space=vmem, size = 0x9000, scoped, tag = 'internal scratch']
  %s0 = inlined_call_operand.hbm [shape: f32[8,32], index: 0, kind: input, shape index: {}]
  %s1 = inlined_call_operand.hbm [shape: f32[32,128], index: 1, kind: input, shape index: {}]
  %s2 = inlined_call_operand.hbm [shape: f32[1,128], index: 2, kind: input, shape index: {}]
  %s3 = inlined_call_operand.hbm [shape: f32[128,128], index: 3, kind: input, shape index: {}]
  %s4 = inlined_call_operand.vmem [shape: f32[1,128], index: 4, kind: input, shape index: {}]
  %s5 = inlined_call_operand.hbm [shape: f32[8,128], index: 5, kind: output, shape index: {}]
  %s6 = sld [smem:[#allocation0]]
  $region46: #{fn.1} parent=0
    _
  %s8 = ssub.s32 1, %s6
  %s9 = scalar_select 0, %s8, %s6
  $region1: #{fn.1} parent=0
    #allocation2 [shape = 'u8[4096]{0}', space=vmem, size = 0x1000, scoped, tag = 'input window, operand 0, single buffered']
    #allocation3 [shape = 's32[1]{0}', space=sflag, size = 0x4, scoped, tag = 'scoped memory for fn.1']
    #allocation4 [shape = 's32[1]{0}', space=sflag, size = 0x4, scoped, tag = 'scoped memory for fn.1']
    #allocation5 [shape = 'u8[16384]{0}', space=vmem, size = 0x4000, scoped, tag = 'input window, operand 1, single buffered']
    #allocation6 [shape = 's32[1]{0}', space=sflag, size = 0x4, scoped, tag = 'scoped memory for fn.1']
    #allocation7 [shape = 'u8[512]{0}', space=vmem, size = 0x400, scoped, tag = 'input window, operand 2, single buffered']
    #allocation8 [shape = 'u8[65536]{0}', space=vmem, size = 0x10000, scoped, tag = 'input window, operand 3, single buffered']
    #allocation9 [shape = 's32[1]{0}', space=sflag, size = 0x4, scoped, tag = 'scoped memory for fn.1']
    #allocation10 [shape = 'u8[4096]{0}', space=vmem, size = 0x1000, scoped, tag = 'output window, operand 0, single buffered']
    %10 = vsyncpa [#allocation3], 0
    %11 = vsyncpa [#allocation6], 0
    %12 = vsyncpa [#allocation9], 0
    %13 = vsyncpa [#allocation4], 0
    // Predicated region
    $region2: #{fn.1} parent=1 // pred_check
      _
    $region3: #{fn.1} parent=1 // pred_check_branch
      %15 = sbr.rel (0) target = $region5
    $region4: #{fn.1} parent=1 // pred_region
      %17 = vsyncadd [#allocation3], 0
      %s19 = sshll.u32 %s0, 4
      %s20 = int_to_ptr.hbm [resolvable:$true] %s19
      %s21 = sshll.u32 [#allocation2], 4
      %s22 = int_to_ptr.vmem [resolvable:$true] %s21
      %24 = dma.hbm_to_vmem [thread:$0]  %s20, 128, %s22, [#allocation3]
    $region5: #{fn.1} parent=1 // pred_fallthru
      _
    // Predicated region
    $region6: #{fn.1} parent=1 // pred_check
      _
    $region7: #{fn.1} parent=1 // pred_check_branch
      %26 = sbr.rel (0) target = $region9
    $region8: #{fn.1} parent=1 // pred_region
      %28 = vsyncadd [#allocation6], 0
      %s29 = sshll.u32 %s1, 4
      %s30 = int_to_ptr.hbm [resolvable:$true] %s29
      %s31 = sshll.u32 [#allocation5], 4
      %s32 = int_to_ptr.vmem [resolvable:$true] %s31
      %37 = dma.hbm_to_vmem [thread:$0]  %s30, 512, %s32, [#allocation6], 128, 128, 8
    $region9: #{fn.1} parent=1 // pred_fallthru
      _
    // Predicated region
    $region10: #{fn.1} parent=1 // pred_check
      _
    $region11: #{fn.1} parent=1 // pred_check_branch
      %39 = sbr.rel (0) target = $region13
    $region12: #{fn.1} parent=1 // pred_region
      %41 = vsyncadd [#allocation6], 0
      %s43 = sshll.u32 %s2, 4
      %s44 = int_to_ptr.hbm [resolvable:$true] %s43
      %s45 = sshll.u32 [#allocation7], 4
      %s46 = int_to_ptr.vmem [resolvable:$true] %s45
      %48 = dma.hbm_to_vmem [thread:$0]  %s44, 16, %s46, [#allocation6]
    $region13: #{fn.1} parent=1 // pred_fallthru
      _
    // Predicated region
    $region14: #{fn.1} parent=1 // pred_check
      _
    $region15: #{fn.1} parent=1 // pred_check_branch
      %50 = sbr.rel (0) target = $region17
    $region16: #{fn.1} parent=1 // pred_region
      %52 = vsyncadd [#allocation9], 0
      %s53 = sshll.u32 %s3, 4
      %s54 = int_to_ptr.hbm [resolvable:$true] %s53
      %s55 = sshll.u32 [#allocation8], 4
      %s56 = int_to_ptr.vmem [resolvable:$true] %s55
      %61 = dma.hbm_to_vmem [thread:$0]  %s54, 2048, %s56, [#allocation9], 128, 128, 8
    $region17: #{fn.1} parent=1 // pred_fallthru
      _
    // Predicated region
    $region18: #{fn.1} parent=1 // pred_check
      _
    $region19: #{fn.1} parent=1 // pred_check_branch
      %63 = sbr.rel (0) target = $region21
    $region20: #{fn.1} parent=1 // pred_region
      _
    $region21: #{fn.1} parent=1 // pred_fallthru
      _
    // Predicated region
    $region22: #{fn.1} parent=1 // pred_check
      _
    $region23: #{fn.1} parent=1 // pred_check_branch
      %65 = sbr.rel (0) target = $region25
    $region24: #{fn.1} parent=1 // pred_region
      %67 = dma.done [#allocation3], 128
    $region25: #{fn.1} parent=1 // pred_fallthru
      _
    // Predicated region
    $region26: #{fn.1} parent=1 // pred_check
      _
    $region27: #{fn.1} parent=1 // pred_check_branch
      %69 = sbr.rel (0) target = $region29
    $region28: #{fn.1} parent=1 // pred_region
      %71 = dma.done [#allocation6], 512
    $region29: #{fn.1} parent=1 // pred_fallthru
      _
    // Predicated region
    $region30: #{fn.1} parent=1 // pred_check
      _
    $region31: #{fn.1} parent=1 // pred_check_branch
      %73 = sbr.rel (0) target = $region33
    $region32: #{fn.1} parent=1 // pred_region
      %75 = dma.done [#allocation6], 16
    $region33: #{fn.1} parent=1 // pred_fallthru
      _
    // Predicated region
    $region34: #{fn.1} parent=1 // pred_check
      _
    $region35: #{fn.1} parent=1 // pred_check_branch
      %77 = sbr.rel (0) target = $region37
    $region36: #{fn.1} parent=1 // pred_region
      %79 = dma.done [#allocation9], 2048
    $region37: #{fn.1} parent=1 // pred_fallthru
      _
    %v80 = vld [vmem:[#allocation2] sm:$0xff]
    %v81 = vld [vmem:[#allocation5] sm:$0xff]
    %v82 = vld [vmem:[#allocation5 + $0x8] sm:$0xff]
    %v83 = vld [vmem:[#allocation5 + $0x10] sm:$0xff]
    %v84 = vld [vmem:[#allocation5 + $0x18] sm:$0xff]
    %v85 = vld [vmem:[#allocation7] sm:$0x1]
    %v87 = vperm.slane %v85, 0
    %vm89 = vcmask 261120
    %v91 = vsel %vm89, %v80, 0
    %93 = vmatpush.msra.mxu0 0.0
    %94 = vmatpush.msra.mxu0 0.0
    %95 = vmatpush.msra.mxu0 0.0
    %96 = vmatpush.msra.mxu0 0.0
    %97 = vmatpush.msra.mxu0 0.0
    %98 = vmatpush.msra.mxu0 0.0
    %99 = vmatpush.msra.mxu0 0.0
    %100 = vmatpush.msra.mxu0 0.0
    %101 = vmatpush.msra.mxu0 0.0
    %102 = vmatpush.msra.mxu0 0.0
    %103 = vmatpush.msra.mxu0 0.0
    %104 = vmatpush.msra.mxu0 0.0
    %105 = vmatpush.msra.mxu0 %v84
    %106 = vmatpush.msra.mxu0 %v83
    %107 = vmatpush.msra.mxu0 %v82
    %108 = vmatpush.msra.mxu0 %v81
    %109 = vmatmul.f32.gmra.mxu0 %v91
    %v110 = vpop.f32.mrf.mxu0
    %v111 = vadd.f32 %v87, %v110
    %112 = vdwg.mxu0
    %v113 = vmax.f32 %v111, 0.0
    %v114 = vld [vmem:[#allocation8] sm:$0xff]
    %v115 = vld [vmem:[#allocation8 + $0x8] sm:$0xff]
    %v116 = vld [vmem:[#allocation8 + $0x10] sm:$0xff]
    %v117 = vld [vmem:[#allocation8 + $0x18] sm:$0xff]
    %v118 = vld [vmem:[#allocation8 + $0x20] sm:$0xff]
    %v119 = vld [vmem:[#allocation8 + $0x28] sm:$0xff]
    %v120 = vld [vmem:[#allocation8 + $0x30] sm:$0xff]
    %v121 = vld [vmem:[#allocation8 + $0x38] sm:$0xff]
    %v122 = vld [vmem:[#allocation8 + $0x40] sm:$0xff]
    %v123 = vld [vmem:[#allocation8 + $0x48] sm:$0xff]
    %v124 = vld [vmem:[#allocation8 + $0x50] sm:$0xff]
    %v125 = vld [vmem:[#allocation8 + $0x58] sm:$0xff]
    %v126 = vld [vmem:[#allocation8 + $0x60] sm:$0xff]
    %v127 = vld [vmem:[#allocation8 + $0x68] sm:$0xff]
    %v128 = vld [vmem:[#allocation8 + $0x70] sm:$0xff]
    %v129 = vld [vmem:[#allocation8 + $0x78] sm:$0xff]
    %v130 = vld [vmem:[%s4] sm:$0x1]
    %v132 = vperm.slane %v130, 0
    %134 = vmatpush.msra.mxu0 %v129
    %135 = vmatpush.msra.mxu0 %v128
    %136 = vmatpush.msra.mxu0 %v127
    %137 = vmatpush.msra.mxu0 %v126
    %138 = vmatpush.msra.mxu0 %v125
    %139 = vmatpush.msra.mxu0 %v124
    %140 = vmatpush.msra.mxu0 %v123
    %141 = vmatpush.msra.mxu0 %v122
    %142 = vmatpush.msra.mxu0 %v121
    %143 = vmatpush.msra.mxu0 %v120
    %144 = vmatpush.msra.mxu0 %v119
    %145 = vmatpush.msra.mxu0 %v118
    %146 = vmatpush.msra.mxu0 %v117
    %147 = vmatpush.msra.mxu0 %v116
    %148 = vmatpush.msra.mxu0 %v115
    %149 = vmatpush.msra.mxu0 %v114
    %150 = vmatmul.f32.gmra.mxu0 %v113
    %v151 = vpop.f32.mrf.mxu0
    %v152 = vadd.f32 %v132, %v151
    %153 = vdwg.mxu0
    %v154 = vxor.u32 %v152, 2147483648
    %v155 = vmul.f32 %v154, 1.442695
    %v156 = vpow.pop %v155
    %v157 = vadd.f32 %v156, 1.0
    %v158 = vrcp.pop %v157
    %v159 = vmul.f32 %v157, %v158
    %v160 = vsub.f32 1.0, %v159
    %v161 = vmul.f32 %v158, %v160
    %v162 = vadd.f32 %v158, %v161
    %vm163 = vweird.f32 %v157
    %vm164 = vweird.f32 %v158
    %vm165 = vmor %vm163, %vm164
    %v166 = vsel %vm165, %v158, %v162
    %v167 = vand.u32 2147483647, %v157
    %vm168 = vcmp.eq.f32.partialorder %v167, 8.507059e+37
    %v169 = vand.u32 %v157, 2147483648
    %v170 = vor.u32 1.1754944e-38, %v169
    %v171 = vsel %vm168, %v170, %v166
    %v172 = vmul.f32 1.0, %v171
    %173 = vst [vmem:[#allocation10] sm:$0xff] %v172
    // Predicated region
    $region38: #{fn.1} parent=1 // pred_check
      _
    $region39: #{fn.1} parent=1 // pred_check_branch
      %175 = sbr.rel (0) target = $region41
    $region40: #{fn.1} parent=1 // pred_region
      %177 = vsyncadd [#allocation4], 0
      %s179 = sshll.u32 [#allocation10], 4
      %s180 = int_to_ptr.vmem [resolvable:$true] %s179
      %s181 = sshll.u32 %s5, 4
      %s182 = int_to_ptr.hbm [resolvable:$true] %s181
      %184 = dma.vmem_to_hbm [thread:$0]  %s180, 128, %s182, [#allocation4]
    $region41: #{fn.1} parent=1 // pred_fallthru
      _
    // Predicated region
    $region42: #{fn.1} parent=1 // pred_check
      _
    $region43: #{fn.1} parent=1 // pred_check_branch
      %186 = sbr.rel (0) target = $region45
    $region44: #{fn.1} parent=1 // pred_region
      %188 = dma.done [#allocation4], 128
    $region45: #{fn.1} parent=1 // pred_fallthru
      _
    %189 = vsyncpa [#allocation3], 1
    %190 = vsyncpa [#allocation6], 1
    %191 = vsyncpa [#allocation9], 1
    %192 = vsyncpa [#allocation4], 1

</llo_original>
